<compile_context>
chip_gen: v7x
topology: tpu7x:2x2x1
jax: 0.10.0
libtpu: 0.0.40
codegen_flags: <defaults>
</compile_context>

<pallas_src>
import jax
import jax.numpy as jnp
from jax.experimental import pallas as pl
from jax.experimental.pallas import tpu as pltpu

_IN_F = 4
_OUT_F = 2
_PACK = 64                  # batch rows packed per lane-dense VMEM row
_K = _IN_F * _PACK          # 256 input lanes per packed row
_N = _OUT_F * _PACK         # 128 output lanes per packed row
_SUBLANES = 8


def _round_up(n, m):
    return ((n + m - 1) // m) * m


def _linear_kernel(w_ref, b_ref, x_ref, o_ref):
    # w_ref: (256, 128) block-diagonal weight (64 copies of W^T), VMEM, resident
    # b_ref: (1, 128)   bias tiled 64x, VMEM, resident
    # x_ref: (tm, 256)  64 packed batch rows per sublane row (lane-dense)
    # o_ref: (tm, 128)  packed outputs (lane-dense, single unmasked store)
    o_ref[...] = (jnp.dot(x_ref[...], w_ref[...],
                          preferred_element_type=jnp.float32)
                  + b_ref[...]).astype(o_ref.dtype)


def _choose_tile_rows(m_rows, block_rows):
    # Each packed row = 64 batch elements; tiles are multiples of 8 sublanes.
    tm = max(_SUBLANES, min(block_rows, (m_rows // _SUBLANES) * _SUBLANES))
    # Prefer >= 2 grid steps (v7x megacore uses both TensorCores) once each
    # half-tile is still large enough (>= 512 rows = 32K batch elements) to
    # amortize the ~0.35-0.6 us per-grid-step pipeline overhead.
    half = _round_up(pl.cdiv(m_rows, 2), _SUBLANES)
    if half >= 512:
        tm = min(tm, half)
    return tm


def position_regression(x, weight, bias=None, *, block_rows=4096,
                        force_pallas=False):
    """Forward pass of PositionRegression (y = x @ W^T + b).

    x:      (B, 4) float32
    weight: (2, 4) float32  (PyTorch fc.weight layout)
    bias:   (2,)   float32 or None
    returns (B, 2) float32
    """
    B, in_f = x.shape
    assert in_f == _IN_F and weight.shape == (_OUT_F, _IN_F)
    if bias is None:
        bias = jnp.zeros((_OUT_F,), x.dtype)

    # Tiny batches: pallas_call launch + DMA setup dominates; let XLA fuse it.
    if B < 2048 and not force_pallas:
        return x @ weight.T + bias[None, :]

    # Pack 64 batch rows per lane-dense row: (B, 4) -> (B/64, 256) is a free
    # row-major reshape (no data movement). Pad rows only when B is ragged.
    Bp = max(_round_up(B, _PACK), _PACK * _SUBLANES)
    if Bp != B:
        x = jnp.pad(x, ((0, Bp - B), (0, 0)))
    m_rows = Bp // _PACK
    x_packed = x.reshape(m_rows, _K)

    # Block-diagonal weight: w_big[4k:4k+4, 2k:2k+2] = W^T, zeros elsewhere,
    # so (tm, 256) @ (256, 128) computes 64 independent 4->2 linears per row.
    w_big = jnp.kron(jnp.eye(_PACK, dtype=weight.dtype), weight.T)   # (256, 128)
    b_big = jnp.tile(bias, _PACK).reshape(1, _N)                     # (1, 128)

    tm = _choose_tile_rows(m_rows, block_rows)
    grid = (pl.cdiv(m_rows, tm),)

    out_packed = pl.pallas_call(
        _linear_kernel,
        out_shape=jax.ShapeDtypeStruct((m_rows, _N), x.dtype),
        grid=grid,
        in_specs=[
            pl.BlockSpec((_K, _N), lambda i: (0, 0)),    # w_big (resident)
            pl.BlockSpec((1, _N), lambda i: (0, 0)),     # b_big (resident)
            pl.BlockSpec((tm, _K), lambda i: (i, 0)),    # packed x tile
        ],
        out_specs=pl.BlockSpec((tm, _N), lambda i: (i, 0)),
        compiler_params=pltpu.CompilerParams(
            dimension_semantics=("parallel",),           # batch tiles independent
            vmem_limit_bytes=32 * 1024 * 1024,           # big-tile headroom (v5e)
        ),
    )(w_big, b_big, x_packed)

    out = out_packed.reshape(Bp, _OUT_F)                 # free row-major reshape
    return out if Bp == B else out[:B]


def init_params(init_scale=1.0, bias=True):
    """Deterministic parameter init mimicking nn.init.orthogonal_ + zero bias."""
    key = jax.random.PRNGKey(42)
    a = jax.random.normal(key, (_IN_F, _OUT_F), dtype=jnp.float32)
    q, r = jnp.linalg.qr(a)                              # (4, 2) orthonormal columns
    q = q * jnp.sign(jnp.diag(r))[None, :]               # sign fix like torch orthogonal_
    weight = init_scale * q.T                            # (2, 4), PyTorch layout
    b = jnp.zeros((_OUT_F,), dtype=jnp.float32) if bias else None
    return weight, b


if __name__ == "__main__":
    weight, b = init_params(init_scale=1.0, bias=True)

    def ref_fn(xx):
        return xx @ weight.T + b[None, :]

    k0, k1, k2 = jax.random.split(jax.random.PRNGKey(0), 3)

    # Small-but-representative batch; force the Pallas path (the wrapper would
    # otherwise route small batches to the plain XLA fallback).
    x1 = jax.random.normal(k0, (1024, 4), dtype=jnp.float32)
    o1 = jax.block_until_ready(position_regression(x1, weight, b, force_pallas=True))
    assert o1.shape == (1024, 2)
    assert jnp.allclose(o1, ref_fn(x1), atol=1e-3, rtol=1e-3), "mismatch (B=1024)"

    # Ragged batch (not a multiple of 64) exercises the row-padding path.
    x2 = jax.random.normal(k1, (300, 4), dtype=jnp.float32)
    o2 = jax.block_until_ready(position_regression(x2, weight, b, force_pallas=True))
    assert o2.shape == (300, 2)
    assert jnp.allclose(o2, ref_fn(x2), atol=1e-3, rtol=1e-3), "mismatch (B=300)"

    # Multi-tile grid with a ragged last tile (tiny block_rows to keep it quick).
    x3 = jax.random.normal(k2, (2112, 4), dtype=jnp.float32)
    o3 = jax.block_until_ready(
        position_regression(x3, weight, b, block_rows=16, force_pallas=True))
    assert o3.shape == (2112, 2)
    assert jnp.allclose(o3, ref_fn(x3), atol=1e-3, rtol=1e-3), "mismatch (B=2112)"

    print("KERNEL_OK")
</pallas_src>

<mosaic_0001>
module attributes {stable_mosaic.version = 11 : i64} {
  func.func @_linear_kernel(%arg0: i32, %arg1: memref<256x128xf32, #tpu.memory_space<vmem>>, %arg2: memref<1x128xf32, #tpu.memory_space<vmem>>, %arg3: memref<16x256xf32, #tpu.memory_space<vmem>>, %arg4: memref<16x128xf32, #tpu.memory_space<vmem>>) attributes {dimension_semantics = [#tpu.dimension_semantics<parallel>], iteration_bounds = array<i64: 1>, scalar_prefetch = 0 : i64, scratch_operands = 0 : i64, tpu.core_type = #tpu.core_type<tc>, window_params = [{pipeline_mode = #tpu.pipeline_mode<synchronous>, transform_indices = @transform_0, window_bounds = array<i64: 256, 128>}, {pipeline_mode = #tpu.pipeline_mode<synchronous>, transform_indices = @transform_1, window_bounds = array<i64: 1, 128>}, {transform_indices = @transform_2, window_bounds = array<i64: 16, 256>}, {transform_indices = @transform_3, window_bounds = array<i64: 16, 128>}]} {
    %c0 = arith.constant 0 : index
    %c0_0 = arith.constant 0 : index
    %0 = vector.load %arg3[%c0, %c0_0] : memref<16x256xf32, #tpu.memory_space<vmem>>, vector<16x256xf32>
    %c0_1 = arith.constant 0 : index
    %c0_2 = arith.constant 0 : index
    %1 = vector.load %arg1[%c0_1, %c0_2] : memref<256x128xf32, #tpu.memory_space<vmem>>, vector<256x128xf32>
    %cst = arith.constant dense<0.000000e+00> : vector<16x128xf32>
    %2 = tpu.matmul %0, %1, %cst {dimension_numbers = #tpu.dot_dimension_numbers<[1], [0], [0], [1], [0, 0, 1, 1], [], []>} : vector<16x256xf32>, vector<256x128xf32>, vector<16x128xf32> -> vector<16x128xf32>
    %c0_3 = arith.constant 0 : index
    %c0_4 = arith.constant 0 : index
    %3 = vector.load %arg2[%c0_3, %c0_4] : memref<1x128xf32, #tpu.memory_space<vmem>>, vector<1x128xf32>
    %4 = vector.broadcast %3 : vector<1x128xf32> to vector<16x128xf32>
    %5 = arith.addf %2, %4 : vector<16x128xf32>
    %c0_5 = arith.constant 0 : index
    %c0_6 = arith.constant 0 : index
    %6 = vector.load %arg4[%c0_5, %c0_6] : memref<16x128xf32, #tpu.memory_space<vmem>>, vector<16x128xf32>
    tpu.vector_store %arg4[%c0_5, %c0_6], %5 {strides = array<i32>} : memref<16x128xf32, #tpu.memory_space<vmem>>, vector<16x128xf32>,
    return
  }
  func.func @transform_0(%arg0: i32) -> (i32, i32) {
    %c0_i32 = arith.constant 0 : i32
    %c0_i32_0 = arith.constant 0 : i32
    %c0_i32_1 = arith.constant 0 : i32
    return %c0_i32, %c0_i32_0 : i32, i32
  }
  func.func @transform_1(%arg0: i32) -> (i32, i32) {
    %c0_i32 = arith.constant 0 : i32
    %c0_i32_0 = arith.constant 0 : i32
    %c0_i32_1 = arith.constant 0 : i32
    return %c0_i32, %c0_i32_0 : i32, i32
  }
  func.func @transform_2(%arg0: i32) -> (i32, i32) {
    %c0_i32 = arith.constant 0 : i32
    %c0_i32_0 = arith.constant 0 : i32
    return %arg0, %c0_i32 : i32, i32
  }
  func.func @transform_3(%arg0: i32) -> (i32, i32) {
    %c0_i32 = arith.constant 0 : i32
    %c0_i32_0 = arith.constant 0 : i32
    return %arg0, %c0_i32 : i32, i32
  }
}

</mosaic_0001>

<llo_original>
// kernel: tpu_custom_call.1
$region0: #{tpu_custom_call.1}
  #allocation0 [shape = 'u32[]', space=smem, size = 0x4, offset = 0x4, fixed_abs, tag = 'smem constant byte address 0x4 - core index']
  #allocation1 [shape = 'u32[144,128]{1,0:T(1,128)}', space=vmem, size = 0x12000, scoped, tag = 'internal scratch']
  %s0 = inlined_call_operand.hbm [shape: f32[256,128], index: 0, kind: input, shape index: {}]
  %s1 = inlined_call_operand.vmem [shape: f32[1,128], index: 1, kind: input, shape index: {}]
  %s2 = inlined_call_operand.hbm [shape: f32[16,256], index: 2, kind: input, shape index: {}]
  %s3 = inlined_call_operand.hbm [shape: f32[16,128], index: 3, kind: output, shape index: {}]
  %s4 = sld [smem:[#allocation0]]
  $region30: #{tpu_custom_call.1} parent=0
    _
  %s6 = ssub.s32 1, %s4
  %s7 = scalar_select 0, %s6, %s4
  $region1: #{tpu_custom_call.1} parent=0
    #allocation2 [shape = 'u8[131072]{0}', space=vmem, size = 0x20000, scoped, tag = 'input window, operand 0, single buffered']
    #allocation3 [shape = 's32[1]{0}', space=sflag, size = 0x4, scoped, tag = 'scoped memory for tpu_custom_call.1']
    #allocation4 [shape = 's32[1]{0}', space=sflag, size = 0x4, scoped, tag = 'scoped memory for tpu_custom_call.1']
    #allocation5 [shape = 'u8[16384]{0}', space=vmem, size = 0x4000, scoped, tag = 'input window, operand 2, single buffered']
    #allocation6 [shape = 's32[1]{0}', space=sflag, size = 0x4, scoped, tag = 'scoped memory for tpu_custom_call.1']
    #allocation7 [shape = 'u8[8192]{0}', space=vmem, size = 0x2000, scoped, tag = 'output window, operand 0, single buffered']
    %8 = vsyncpa [#allocation3], 0
    %9 = vsyncpa [#allocation6], 0
    %10 = vsyncpa [#allocation4], 0
    // Predicated region
    $region2: #{tpu_custom_call.1} parent=1 // pred_check
      _
    $region3: #{tpu_custom_call.1} parent=1 // pred_check_branch
      %12 = sbr.rel (0) target = $region5
    $region4: #{tpu_custom_call.1} parent=1 // pred_region
      %s14 = ssub.s32 4096, 4096
      %15 = vsyncadd [#allocation3], %s14
      %s16 = sshll.u32 [#allocation2], 4
      %s17 = int_to_ptr.vmem [resolvable:$true] %s16
      %22 = dma.hbm_to_vmem [thread:$0]  %s0, 4096, %s17, [#allocation3], 128, 128, 8
    $region5: #{tpu_custom_call.1} parent=1 // pred_fallthru
      _
    // Predicated region
    $region6: #{tpu_custom_call.1} parent=1 // pred_check
      _
    $region7: #{tpu_custom_call.1} parent=1 // pred_check_branch
      %24 = sbr.rel (0) target = $region9
    $region8: #{tpu_custom_call.1} parent=1 // pred_region
      _
    $region9: #{tpu_custom_call.1} parent=1 // pred_fallthru
      _
    // Predicated region
    $region10: #{tpu_custom_call.1} parent=1 // pred_check
      _
    $region11: #{tpu_custom_call.1} parent=1 // pred_check_branch
      %26 = sbr.rel (0) target = $region13
    $region12: #{tpu_custom_call.1} parent=1 // pred_region
      %s28 = ssub.s32 512, 512
      %29 = vsyncadd [#allocation6], %s28
      %s30 = sshll.u32 [#allocation5], 4
      %s31 = int_to_ptr.vmem [resolvable:$true] %s30
      %36 = dma.hbm_to_vmem [thread:$0]  %s2, 512, %s31, [#allocation6], 256, 256, 16
    $region13: #{tpu_custom_call.1} parent=1 // pred_fallthru
      _
    // Predicated region
    $region14: #{tpu_custom_call.1} parent=1 // pred_check
      _
    $region15: #{tpu_custom_call.1} parent=1 // pred_check_branch
      %38 = sbr.rel (0) target = $region17
    $region16: #{tpu_custom_call.1} parent=1 // pred_region
      %39 = dma.done [#allocation3], 4096
    $region17: #{tpu_custom_call.1} parent=1 // pred_fallthru
      _
    // Predicated region
    $region18: #{tpu_custom_call.1} parent=1 // pred_check
      _
    $region19: #{tpu_custom_call.1} parent=1 // pred_check_branch
      %41 = sbr.rel (0) target = $region21
    $region20: #{tpu_custom_call.1} parent=1 // pred_region
      %42 = dma.done [#allocation6], 512
    $region21: #{tpu_custom_call.1} parent=1 // pred_fallthru
      _
    %v43 = vld [vmem:[#allocation5] sm:$0xff]
    %v44 = vld [vmem:[#allocation5 + $0x8] sm:$0xff]
    %v45 = vld [vmem:[#allocation5 + $0x10] sm:$0xff]
    %v46 = vld [vmem:[#allocation5 + $0x18] sm:$0xff]
    %v47 = vld [vmem:[#allocation2] sm:$0xff]
    %v48 = vld [vmem:[#allocation2 + $0x8] sm:$0xff]
    %v49 = vld [vmem:[#allocation2 + $0x10] sm:$0xff]
    %v50 = vld [vmem:[#allocation2 + $0x18] sm:$0xff]
    %v51 = vld [vmem:[#allocation2 + $0x20] sm:$0xff]
    %v52 = vld [vmem:[#allocation2 + $0x28] sm:$0xff]
    %v53 = vld [vmem:[#allocation2 + $0x30] sm:$0xff]
    %v54 = vld [vmem:[#allocation2 + $0x38] sm:$0xff]
    %v55 = vld [vmem:[#allocation2 + $0x40] sm:$0xff]
    %v56 = vld [vmem:[#allocation2 + $0x48] sm:$0xff]
    %v57 = vld [vmem:[#allocation2 + $0x50] sm:$0xff]
    %v58 = vld [vmem:[#allocation2 + $0x58] sm:$0xff]
    %v59 = vld [vmem:[#allocation2 + $0x60] sm:$0xff]
    %v60 = vld [vmem:[#allocation2 + $0x68] sm:$0xff]
    %v61 = vld [vmem:[#allocation2 + $0x70] sm:$0xff]
    %v62 = vld [vmem:[#allocation2 + $0x78] sm:$0xff]
    %v63 = vld [vmem:[#allocation2 + $0x80] sm:$0xff]
    %v64 = vld [vmem:[#allocation2 + $0x88] sm:$0xff]
    %v65 = vld [vmem:[#allocation2 + $0x90] sm:$0xff]
    %v66 = vld [vmem:[#allocation2 + $0x98] sm:$0xff]
    %v67 = vld [vmem:[#allocation2 + $0xa0] sm:$0xff]
    %v68 = vld [vmem:[#allocation2 + $0xa8] sm:$0xff]
    %v69 = vld [vmem:[#allocation2 + $0xb0] sm:$0xff]
    %v70 = vld [vmem:[#allocation2 + $0xb8] sm:$0xff]
    %v71 = vld [vmem:[#allocation2 + $0xc0] sm:$0xff]
    %v72 = vld [vmem:[#allocation2 + $0xc8] sm:$0xff]
    %v73 = vld [vmem:[#allocation2 + $0xd0] sm:$0xff]
    %v74 = vld [vmem:[#allocation2 + $0xd8] sm:$0xff]
    %v75 = vld [vmem:[#allocation2 + $0xe0] sm:$0xff]
    %v76 = vld [vmem:[#allocation2 + $0xe8] sm:$0xff]
    %v77 = vld [vmem:[#allocation2 + $0xf0] sm:$0xff]
    %v78 = vld [vmem:[#allocation2 + $0xf8] sm:$0xff]
    %v79 = vld [vmem:[%s1] sm:$0x1]
    %v81 = vlaneseq
    %v82 = vshrl.u32 %v81, 7
    %v83 = vsub.s32 0, %v82
    %v84 = vrot.slane %v79, %v83
    %86 = vmatprep.subr.mxu0 0.0
    %87 = vmatpush1.msra.mxu0 %v47
    %88 = vmatprep.subr.mxu0 0.0
    %89 = vmatpush1.msra.mxu0 %v48
    %90 = vmatprep.subr.mxu0 0.0
    %91 = vmatpush1.msra.mxu0 %v49
    %92 = vmatprep.subr.mxu0 0.0
    %93 = vmatpush1.msra.mxu0 %v50
    %94 = vmatprep.subr.mxu0 0.0
    %95 = vmatpush1.msra.mxu0 %v51
    %96 = vmatprep.subr.mxu0 0.0
    %97 = vmatpush1.msra.mxu0 %v52
    %98 = vmatprep.subr.mxu0 0.0
    %99 = vmatpush1.msra.mxu0 %v53
    %100 = vmatprep.subr.mxu0 0.0
    %101 = vmatpush1.msra.mxu0 %v54
    %102 = vmatprep.subr.mxu0 0.0
    %103 = vmatpush1.msra.mxu0 %v55
    %104 = vmatprep.subr.mxu0 0.0
    %105 = vmatpush1.msra.mxu0 %v56
    %106 = vmatprep.subr.mxu0 0.0
    %107 = vmatpush1.msra.mxu0 %v57
    %108 = vmatprep.subr.mxu0 0.0
    %109 = vmatpush1.msra.mxu0 %v58
    %110 = vmatprep.subr.mxu0 0.0
    %111 = vmatpush1.msra.mxu0 %v59
    %112 = vmatprep.subr.mxu0 0.0
    %113 = vmatpush1.msra.mxu0 %v60
    %114 = vmatprep.subr.mxu0 0.0
    %115 = vmatpush1.msra.mxu0 %v61
    %116 = vmatprep.subr.mxu0 0.0
    %117 = vmatpush1.msra.mxu0 %v62
    %118 = vmatprep.subr.mxu0 0.0
    %119 = vmatpush1.msra.mxu0 %v63
    %120 = vmatprep.subr.mxu0 0.0
    %121 = vmatpush1.msra.mxu0 %v64
    %122 = vmatprep.subr.mxu0 0.0
    %123 = vmatpush1.msra.mxu0 %v65
    %124 = vmatprep.subr.mxu0 0.0
    %125 = vmatpush1.msra.mxu0 %v66
    %126 = vmatprep.subr.mxu0 0.0
    %127 = vmatpush1.msra.mxu0 %v67
    %128 = vmatprep.subr.mxu0 0.0
    %129 = vmatpush1.msra.mxu0 %v68
    %130 = vmatprep.subr.mxu0 0.0
    %131 = vmatpush1.msra.mxu0 %v69
    %132 = vmatprep.subr.mxu0 0.0
    %133 = vmatpush1.msra.mxu0 %v70
    %134 = vmatprep.subr.mxu0 0.0
    %135 = vmatpush1.msra.mxu0 %v71
    %136 = vmatprep.subr.mxu0 0.0
    %137 = vmatpush1.msra.mxu0 %v72
    %138 = vmatprep.subr.mxu0 0.0
    %139 = vmatpush1.msra.mxu0 %v73
    %140 = vmatprep.subr.mxu0 0.0
    %141 = vmatpush1.msra.mxu0 %v74
    %142 = vmatprep.subr.mxu0 0.0
    %143 = vmatpush1.msra.mxu0 %v75
    %144 = vmatprep.subr.mxu0 0.0
    %145 = vmatpush1.msra.mxu0 %v76
    %146 = vmatprep.subr.mxu0 0.0
    %147 = vmatpush1.msra.mxu0 %v77
    %148 = vmatprep.subr.mxu0 0.0
    %149 = vmatpush1.msra.mxu0 %v78
    %150 = vmatprep.mubr.f32.mxu0 %v44
    %151 = vmatmul.mubr.f32.gmra.mrb[0].mxu0 %v43
    %v152 = vpop.f32.mrb[0].mxu0
    %v153 = vadd.f32 %v84, %v152
    %v154 = vpop.f32.mrb[0].mxu0
    %155 = vmatprep.mubr.f32.mxu0 %v46
    %156 = vmatmul.mubr.f32.gmra.mrb[0].mxu0 %v45
    %v157 = vpop.f32.mrb[0].mxu0
    %v158 = vadd.f32 %v84, %v157
    %v159 = vpop.f32.mrb[0].mxu0
    %160 = vdwg.mxu0
    %161 = vst [vmem:[#allocation7] sm:$0xff] %v153
    %162 = vst [vmem:[#allocation7 + $0x8] sm:$0xff] %v158
    // Predicated region
    $region22: #{tpu_custom_call.1} parent=1 // pred_check
      _
    $region23: #{tpu_custom_call.1} parent=1 // pred_check_branch
      %164 = sbr.rel (0) target = $region25
    $region24: #{tpu_custom_call.1} parent=1 // pred_region
      %s166 = ssub.s32 256, 256
      %167 = vsyncadd [#allocation4], %s166
      %s168 = sshll.u32 [#allocation7], 4
      %s169 = int_to_ptr.vmem [resolvable:$true] %s168
      %174 = dma.vmem_to_hbm [thread:$0]  %s169, 256, %s3, [#allocation4], 128, 128, 8
    $region25: #{tpu_custom_call.1} parent=1 // pred_fallthru
      _
    // Predicated region
    $region26: #{tpu_custom_call.1} parent=1 // pred_check
      _
    $region27: #{tpu_custom_call.1} parent=1 // pred_check_branch
      %176 = sbr.rel (0) target = $region29
    $region28: #{tpu_custom_call.1} parent=1 // pred_region
      %177 = dma.done [#allocation4], 256
    $region29: #{tpu_custom_call.1} parent=1 // pred_fallthru
      _
    %178 = vsyncpa [#allocation3], 1
    %179 = vsyncpa [#allocation6], 1
    %180 = vsyncpa [#allocation4], 1

</llo_original>
